<compile_context>
chip_gen: v5e
topology: v5e:2x2
jax: 0.10.0
libtpu: 0.0.40
codegen_flags: <defaults>
</compile_context>

<pallas_src>
import functools

import jax
import jax.numpy as jnp
from jax.experimental import pallas as pl
from jax.experimental.pallas import tpu as pltpu


def _round_up(x, m):
    return int(pl.cdiv(x, m)) * m


def attention_head_kernel(x_ref, w_ref, bw_ref, v_ref, out_ref, *, s_valid):
    # x_ref : (B_BLK, S_pad, F_pad) bf16   block of (padded) input features
    # w_ref : (F_pad, H)            bf16   W weight, laid out for x @ W
    # bw_ref: (1, H)                f32    W bias
    # v_ref : (1, 1, H)             f32    V weight as a row vector
    # out_ref: (B_BLK, F_pad)       f32    pooled context vectors
    b_blk, s_pad, f_pad = x_ref.shape
    h = w_ref.shape[1]

    x3 = x_ref[...]                                     # (B_BLK, S_pad, F_pad) bf16
    # Free leading-dim collapse: wrapper guarantees S_pad % 16 == 0 (bf16 pack).
    x2 = x3.reshape(b_blk * s_pad, f_pad)               # (M, F_pad)

    # Single large-M MXU matmul (bf16 x bf16 -> f32 accumulation).
    att = jnp.tanh(
        jnp.dot(x2, w_ref[...], preferred_element_type=jnp.float32)
        + bw_ref[...]
    )                                                   # (M, H) f32

    # V projection as VPU multiply + lane reduction -> lane-dense (B_BLK, S)
    # score.  b_V omitted: a constant logit shift cancels in softmax.
    att3 = att.reshape(b_blk, s_pad, h)                 # free: S_pad % 8 == 0
    score = jnp.sum(att3 * v_ref[...], axis=-1)         # (B_BLK, S_pad)

    if s_valid != s_pad:
        # Mask padded sequence rows so they get zero attention weight.
        seq_ids = jax.lax.broadcasted_iota(jnp.int32, (b_blk, s_pad), 1)
        score = jnp.where(seq_ids < s_valid, score, jnp.float32(-1e30))

    # Numerically-stable softmax over the sequence axis (lane reductions).
    score = score - jnp.max(score, axis=-1, keepdims=True)
    e = jnp.exp(score)
    attn = e * pl.reciprocal(jnp.sum(e, axis=-1, keepdims=True), approx=True)

    # Attention-weighted sum of the input features on the MXU:
    # batched (1, S_pad) @ (S_pad, F_pad) contraction, f32 accumulation.
    # attn is in [0, 1], so the bf16 cast of the weights is benign.
    attn3 = attn.astype(jnp.bfloat16)[:, None, :]       # (B_BLK, 1, S_pad)
    ctx = jax.lax.dot_general(
        attn3, x3,
        dimension_numbers=(((2,), (1,)), ((0,), (0,))),
        preferred_element_type=jnp.float32)             # (B_BLK, 1, F_pad)
    out_ref[...] = ctx[:, 0, :]                         # lane-dense store


def _vmem_budget_and_limit():
    """Generation-aware VMEM working-set budget and Mosaic scoped-VMEM limit."""
    try:
        cap = int(pltpu.get_tpu_info().vmem_capacity_bytes)
    except Exception:
        cap = 64 * 1024 * 1024          # conservative fallback (v7x physical)
    budget = (cap * 5) // 8             # ~80 MiB on v5e/v6e, ~40 MiB on v7x
    limit = min(cap - (2 << 20), budget + cap // 8)
    return budget, int(limit)


def _pick_batch_block(batch, seq_pad, feat_pad, hid, *, vmem_budget_bytes,
                      min_grid_steps=4):
    """Largest batch block that (a) fits the VMEM budget, (b) divides `batch`,
    (c) keeps the grid >= min_grid_steps when possible (megacore on v7x), and
    (d) prefers sublane-aligned (or full-batch) output blocks."""
    per_b = (2 * seq_pad * feat_pad * 2      # double-buffered bf16 x block
             + 2 * seq_pad * hid * 4         # f32 att + score/product temps
             + seq_pad * 16 + feat_pad * 8)  # attn rows + ctx rows
    fixed = 2 * feat_pad * hid * 2 + hid * 16 + (4 << 20)  # W dbl-buf + scratch
    avail = max(vmem_budget_bytes - fixed, per_b)
    cap = max(1, int(avail // per_b))
    if batch >= min_grid_steps:
        cap = min(cap, batch // min_grid_steps)
    cap = min(cap, batch)

    divs = [d for d in range(1, cap + 1) if batch % d == 0]
    aligned = [d for d in divs if d == batch or d % 8 == 0]
    return max(aligned) if aligned else max(divs)


def attention_head(features, w, b_w, v, b_v=None, *, b_blk=None):
    """features: (B, S, F); w: (F, H) (x @ W layout); b_w: (H,); v: (H, 1) or
    (H,); b_v accepted for interface parity but unused (softmax-invariant)."""
    B, S, F = features.shape
    H = w.shape[1]

    S_pad = _round_up(S, 16)    # bf16 sublane pack -> free in-kernel reshape
    F_pad = _round_up(F, 128)   # lane-dense x block / output store

    x = features.astype(jnp.bfloat16)                  # halve HBM bytes moved
    if (S_pad, F_pad) != (S, F):
        x = jnp.pad(x, ((0, 0), (0, S_pad - S), (0, F_pad - F)))
    w_p = w.astype(jnp.bfloat16)
    if F_pad != F:
        w_p = jnp.pad(w_p, ((0, F_pad - F), (0, 0)))   # zero rows: no-op in x@W
    bw2 = b_w.reshape(1, H).astype(jnp.float32)
    v_row = jnp.reshape(v, (1, 1, H)).astype(jnp.float32)

    budget, vmem_limit = _vmem_budget_and_limit()
    if b_blk is None:
        b_blk = _pick_batch_block(B, S_pad, F_pad, H, vmem_budget_bytes=budget)
    assert B % b_blk == 0
    grid_b = B // b_blk

    kern = functools.partial(attention_head_kernel, s_valid=S)

    # TODO(synk): for very long S that no longer fits a single block, add an
    # S-tiled grid axis with flash-style online-softmax accumulators.
    # TODO(synk): on v7x, mark the constant W/b_W/V specs pipeline_mode=
    # pl.Buffered(1) (single buffer) and consider fp8 x/W to reclaim VMEM and
    # HBM bandwidth; sweep pl.Buffered(2) vs (3) on the features spec via xprof.
    out = pl.pallas_call(
        kern,
        out_shape=jax.ShapeDtypeStruct((B, F_pad), jnp.float32),
        grid_spec=pltpu.PrefetchScalarGridSpec(
            num_scalar_prefetch=0,
            grid=(grid_b,),
            in_specs=[
                pl.BlockSpec((b_blk, S_pad, F_pad), lambda b: (b, 0, 0)),  # x
                pl.BlockSpec((F_pad, H), lambda b: (0, 0)),                # W
                pl.BlockSpec((1, H), lambda b: (0, 0)),                    # b_W
                pl.BlockSpec((1, 1, H), lambda b: (0, 0, 0)),              # V
            ],
            out_specs=pl.BlockSpec((b_blk, F_pad), lambda b: (b, 0)),
        ),
        compiler_params=pltpu.CompilerParams(
            dimension_semantics=("parallel",),
            vmem_limit_bytes=int(vmem_limit),
        ),
    )(x, w_p, bw2, v_row)

    return out[:, :F] if F_pad != F else out


def attention_head_ref(features, w, b_w, v, b_v):
    """Pure-JAX reference matching the PyTorch forward."""
    att = jnp.tanh(features @ w + b_w)                 # (B, S, H)
    score = att @ v + b_v                              # (B, S, 1)
    attn = jax.nn.softmax(score, axis=1)               # softmax over sequence
    return jnp.sum(attn * features, axis=1)            # (B, F)


if __name__ == "__main__":
    B, S, F, H = 2, 8, 32, 32

    key = jax.random.PRNGKey(0)
    k1, k2, k3, k4, k5 = jax.random.split(key, 5)

    features = jax.random.normal(k1, (B, S, F), dtype=jnp.float32)
    # Parameters stored directly in x @ W layout (Linear(F, H), Linear(H, 1)).
    w = jax.random.normal(k2, (F, H), dtype=jnp.float32) * 0.1
    b_w = jax.random.normal(k3, (H,), dtype=jnp.float32) * 0.1
    v = jax.random.normal(k4, (H, 1), dtype=jnp.float32) * 0.1
    b_v = jax.random.normal(k5, (1,), dtype=jnp.float32) * 0.1

    out = attention_head(features, w, b_w, v, b_v)
    out = jax.block_until_ready(out)

    # Reference evaluated on bf16-rounded features/W (the kernel DMAs them in
    # bf16 and accumulates in f32); remaining differences are accumulation
    # order, the bf16 attention-weight cast and the approximate reciprocal.
    feats_r = features.astype(jnp.bfloat16).astype(jnp.float32)
    w_r = w.astype(jnp.bfloat16).astype(jnp.float32)
    ref = attention_head_ref(feats_r, w_r, b_w, v, b_v)

    assert out.shape == (B, F)
    err = jnp.max(jnp.abs(out - ref))
    assert jnp.allclose(out, ref, atol=2e-2, rtol=2e-2), f"max abs err {err}"
    print("KERNEL_OK")
</pallas_src>

<mosaic_0001>
module attributes {stable_mosaic.version = 11 : i64} {
  func.func @attention_head_kernel(%arg0: i32, %arg1: memref<2x16x128xbf16, #tpu.memory_space<vmem>>, %arg2: memref<128x32xbf16, #tpu.memory_space<vmem>>, %arg3: memref<1x32xf32, #tpu.memory_space<vmem>>, %arg4: memref<1x1x32xf32, #tpu.memory_space<vmem>>, %arg5: memref<2x128xf32, #tpu.memory_space<vmem>>) attributes {dimension_semantics = [#tpu.dimension_semantics<parallel>], iteration_bounds = array<i64: 1>, scalar_prefetch = 0 : i64, scratch_operands = 0 : i64, tpu.core_type = #tpu.core_type<tc>, window_params = [{transform_indices = @transform_0, window_bounds = array<i64: 2, 16, 128>}, {pipeline_mode = #tpu.pipeline_mode<synchronous>, transform_indices = @transform_1, window_bounds = array<i64: 128, 32>}, {pipeline_mode = #tpu.pipeline_mode<synchronous>, transform_indices = @transform_2, window_bounds = array<i64: 1, 32>}, {pipeline_mode = #tpu.pipeline_mode<synchronous>, transform_indices = @transform_3, window_bounds = array<i64: 1, 1, 32>}, {transform_indices = @transform_4, window_bounds = array<i64: 2, 128>}]} {
    %c0 = arith.constant 0 : index
    %c0_0 = arith.constant 0 : index
    %c0_1 = arith.constant 0 : index
    %0 = vector.load %arg1[%c0, %c0_0, %c0_1] : memref<2x16x128xbf16, #tpu.memory_space<vmem>>, vector<2x16x128xbf16>
    %1 = vector.shape_cast %0 : vector<2x16x128xbf16> to vector<32x128xbf16>
    %c0_2 = arith.constant 0 : index
    %c0_3 = arith.constant 0 : index
    %2 = vector.load %arg2[%c0_2, %c0_3] : memref<128x32xbf16, #tpu.memory_space<vmem>>, vector<128x32xbf16>
    %cst = arith.constant dense<0.000000e+00> : vector<32x32xf32>
    %3 = tpu.matmul %1, %2, %cst {dimension_numbers = #tpu.dot_dimension_numbers<[1], [0], [0], [1], [0, 0, 1, 1], [], []>} : vector<32x128xbf16>, vector<128x32xbf16>, vector<32x32xf32> -> vector<32x32xf32>
    %c0_4 = arith.constant 0 : index
    %c0_5 = arith.constant 0 : index
    %4 = vector.load %arg3[%c0_4, %c0_5] : memref<1x32xf32, #tpu.memory_space<vmem>>, vector<1x32xf32>
    %5 = vector.broadcast %4 : vector<1x32xf32> to vector<32x32xf32>
    %6 = arith.addf %3, %5 : vector<32x32xf32>
    %7 = math.tanh %6 : vector<32x32xf32>
    %8 = vector.shape_cast %7 : vector<32x32xf32> to vector<2x16x32xf32>
    %c0_6 = arith.constant 0 : index
    %c0_7 = arith.constant 0 : index
    %c0_8 = arith.constant 0 : index
    %9 = vector.load %arg4[%c0_6, %c0_7, %c0_8] : memref<1x1x32xf32, #tpu.memory_space<vmem>>, vector<1x1x32xf32>
    %10 = vector.broadcast %9 : vector<1x1x32xf32> to vector<2x16x32xf32>
    %11 = arith.mulf %8, %10 : vector<2x16x32xf32>
    %cst_9 = arith.constant dense<0.000000e+00> : vector<2x16xf32>
    %12 = vector.multi_reduction <add>, %11, %cst_9 [2] : vector<2x16x32xf32> to vector<2x16xf32>
    %13 = tpu.iota {dimensions = array<i32: 1>} : vector<2x16xi32>
    %c8_i32 = arith.constant 8 : i32
    %14 = vector.broadcast %c8_i32 : i32 to vector<2x16xi32>
    %15 = arith.cmpi slt, %13, %14 : vector<2x16xi32>
    %cst_10 = arith.constant -1.000000e+30 : f32
    %16 = vector.broadcast %cst_10 : f32 to vector<2x16xf32>
    %17 = arith.select %15, %12, %16 : vector<2x16xi1>, vector<2x16xf32>
    %cst_11 = arith.constant dense<0xFF800000> : vector<2xf32>
    %18 = vector.multi_reduction <maximumf>, %17, %cst_11 [1] : vector<2x16xf32> to vector<2xf32>
    %19 = vector.shape_cast %18 : vector<2xf32> to vector<2x1xf32>
    %20 = vector.broadcast %19 : vector<2x1xf32> to vector<2x16xf32>
    %21 = arith.subf %17, %20 : vector<2x16xf32>
    %22 = math.exp %21 : vector<2x16xf32>
    %cst_12 = arith.constant dense<0.000000e+00> : vector<2xf32>
    %23 = vector.multi_reduction <add>, %22, %cst_12 [1] : vector<2x16xf32> to vector<2xf32>
    %24 = vector.shape_cast %23 : vector<2xf32> to vector<2x1xf32>
    %25 = tpu.reciprocal %24 {approx = true} : vector<2x1xf32> -> vector<2x1xf32>
    %26 = vector.broadcast %25 : vector<2x1xf32> to vector<2x16xf32>
    %27 = arith.mulf %22, %26 : vector<2x16xf32>
    %28 = arith.truncf %27 : vector<2x16xf32> to vector<2x16xbf16>
    %29 = vector.shape_cast %28 : vector<2x16xbf16> to vector<2x1x16xbf16>
    %cst_13 = arith.constant dense<0.000000e+00> : vector<2x1x128xf32>
    %30 = tpu.matmul %29, %0, %cst_13 {dimension_numbers = #tpu.dot_dimension_numbers<[2], [1], [1], [2], [0, 0, 0, 1, 1, 2], [0], [0]>} : vector<2x1x16xbf16>, vector<2x16x128xbf16>, vector<2x1x128xf32> -> vector<2x1x128xf32>
    %31 = vector.shape_cast %30 : vector<2x1x128xf32> to vector<2x128xf32>
    %c0_14 = arith.constant 0 : index
    %c0_15 = arith.constant 0 : index
    %32 = vector.load %arg5[%c0_14, %c0_15] : memref<2x128xf32, #tpu.memory_space<vmem>>, vector<2x128xf32>
    tpu.vector_store %arg5[%c0_14, %c0_15], %31 {strides = array<i32>} : memref<2x128xf32, #tpu.memory_space<vmem>>, vector<2x128xf32>,
    return
  }
  func.func @transform_0(%arg0: i32) -> (i32, i32, i32) {
    %c0_i32 = arith.constant 0 : i32
    %c0_i32_0 = arith.constant 0 : i32
    %c0_i32_1 = arith.constant 0 : i32
    return %arg0, %c0_i32, %c0_i32_0 : i32, i32, i32
  }
  func.func @transform_1(%arg0: i32) -> (i32, i32) {
    %c0_i32 = arith.constant 0 : i32
    %c0_i32_0 = arith.constant 0 : i32
    %c0_i32_1 = arith.constant 0 : i32
    return %c0_i32, %c0_i32_0 : i32, i32
  }
  func.func @transform_2(%arg0: i32) -> (i32, i32) {
    %c0_i32 = arith.constant 0 : i32
    %c0_i32_0 = arith.constant 0 : i32
    %c0_i32_1 = arith.constant 0 : i32
    return %c0_i32, %c0_i32_0 : i32, i32
  }
  func.func @transform_3(%arg0: i32) -> (i32, i32, i32) {
    %c0_i32 = arith.constant 0 : i32
    %c0_i32_0 = arith.constant 0 : i32
    %c0_i32_1 = arith.constant 0 : i32
    %c0_i32_2 = arith.constant 0 : i32
    return %c0_i32, %c0_i32_0, %c0_i32_1 : i32, i32, i32
  }
  func.func @transform_4(%arg0: i32) -> (i32, i32) {
    %c0_i32 = arith.constant 0 : i32
    %c0_i32_0 = arith.constant 0 : i32
    return %arg0, %c0_i32 : i32, i32
  }
}

</mosaic_0001>

<llo_original>
// kernel: tpu_custom_call.1
$region0: #{tpu_custom_call.1}
  #allocation0 [shape = 'u32[]', space=smem, size = 0x4, offset = 0x4, fixed_abs, tag = 'smem constant byte address 0x4 - core index']
  #allocation1 [shape = 'u32[72,128]{1,0:T(1,128)}', space=vmem, size = 0x9000, scoped, tag = 'internal scratch']
  %s0 = inlined_call_operand.vmem [shape: bf16[2,16,128], index: 0, kind: input, shape index: {}]
  %s1 = inlined_call_operand.vmem [shape: bf16[128,32], index: 1, kind: input, shape index: {}]
  %s2 = inlined_call_operand.vmem [shape: f32[1,32], index: 2, kind: input, shape index: {}]
  %s3 = inlined_call_operand.vmem [shape: f32[1,1,32], index: 3, kind: input, shape index: {}]
  %s4 = inlined_call_operand.hbm [shape: f32[2,128], index: 4, kind: output, shape index: {}]
  %s5 = sld [smem:[#allocation0]]
  $region26: #{tpu_custom_call.1} parent=0
    _
  %s7 = ssub.s32 1, %s5
  %s8 = scalar_select 0, %s7, %s5
  $region1: #{tpu_custom_call.1} parent=0
    #allocation2 [shape = 'u8[1024]{0}', space=vmem, size = 0x400, scoped, tag = 'output window, operand 0, single buffered']
    #allocation3 [shape = 's32[1]{0}', space=sflag, size = 0x4, scoped, tag = 'scoped memory for tpu_custom_call.1']
    %9 = vsyncpa [#allocation3], 0
    // Predicated region
    $region2: #{tpu_custom_call.1} parent=1 // pred_check
      _
    $region3: #{tpu_custom_call.1} parent=1 // pred_check_branch
      %11 = sbr.rel (0) target = $region5
    $region4: #{tpu_custom_call.1} parent=1 // pred_region
      _
    $region5: #{tpu_custom_call.1} parent=1 // pred_fallthru
      _
    // Predicated region
    $region6: #{tpu_custom_call.1} parent=1 // pred_check
      _
    $region7: #{tpu_custom_call.1} parent=1 // pred_check_branch
      %13 = sbr.rel (0) target = $region9
    $region8: #{tpu_custom_call.1} parent=1 // pred_region
      _
    $region9: #{tpu_custom_call.1} parent=1 // pred_fallthru
      _
    // Predicated region
    $region10: #{tpu_custom_call.1} parent=1 // pred_check
      _
    $region11: #{tpu_custom_call.1} parent=1 // pred_check_branch
      %15 = sbr.rel (0) target = $region13
    $region12: #{tpu_custom_call.1} parent=1 // pred_region
      _
    $region13: #{tpu_custom_call.1} parent=1 // pred_fallthru
      _
    // Predicated region
    $region14: #{tpu_custom_call.1} parent=1 // pred_check
      _
    $region15: #{tpu_custom_call.1} parent=1 // pred_check_branch
      %17 = sbr.rel (0) target = $region17
    $region16: #{tpu_custom_call.1} parent=1 // pred_region
      _
    $region17: #{tpu_custom_call.1} parent=1 // pred_fallthru
      _
    %v19 = vld [vmem:[%s0] sm:$0xf]
    %v20 = vld [vmem:[%s0 + $0x4] sm:$0xf]
    %v21 = vld [vmem:[%s0 + $0x8] sm:$0xf]
    %v22 = vld [vmem:[%s0 + $0xc] sm:$0xf]
    %v23 = vld [vmem:[%s1] sm:$0xf]
    %v24 = vld [vmem:[%s1 + $0x4] sm:$0xf]
    %v25 = vld [vmem:[%s1 + $0x8] sm:$0xf]
    %v26 = vld [vmem:[%s1 + $0xc] sm:$0xf]
    %v27 = vld [vmem:[%s1 + $0x10] sm:$0xf]
    %v28 = vld [vmem:[%s1 + $0x14] sm:$0xf]
    %v29 = vld [vmem:[%s1 + $0x18] sm:$0xf]
    %v30 = vld [vmem:[%s1 + $0x1c] sm:$0xf]
    %v31 = vld [vmem:[%s1 + $0x20] sm:$0xf]
    %v32 = vld [vmem:[%s1 + $0x24] sm:$0xf]
    %v33 = vld [vmem:[%s1 + $0x28] sm:$0xf]
    %v34 = vld [vmem:[%s1 + $0x2c] sm:$0xf]
    %v35 = vld [vmem:[%s1 + $0x30] sm:$0xf]
    %v36 = vld [vmem:[%s1 + $0x34] sm:$0xf]
    %v37 = vld [vmem:[%s1 + $0x38] sm:$0xf]
    %v38 = vld [vmem:[%s1 + $0x3c] sm:$0xf]
    %v39 = vld [vmem:[%s2] sm:$0x1]
    %v41 = vperm.slane %v39, 0
    %v47 = vunpack.c.l.b16 %v19
    %v48 = vunpack.c.l.b16 %v20
    %v49 = vunpack.c.l.b16 %v21
    %v50 = vunpack.c.l.b16 %v22
    %v51 = vpack.c.b16 %v48, %v47
    %v52 = vpack.c.b16 %v50, %v49
    %v71 = vunpack.c.l.b16 %v23
    %v72 = vunpack.c.l.b16 %v24
    %v73 = vunpack.c.l.b16 %v25
    %v74 = vunpack.c.l.b16 %v26
    %v75 = vunpack.c.l.b16 %v27
    %v76 = vunpack.c.l.b16 %v28
    %v77 = vunpack.c.l.b16 %v29
    %v78 = vunpack.c.l.b16 %v30
    %v79 = vunpack.c.l.b16 %v31
    %v80 = vunpack.c.l.b16 %v32
    %v81 = vunpack.c.l.b16 %v33
    %v82 = vunpack.c.l.b16 %v34
    %v83 = vunpack.c.l.b16 %v35
    %v84 = vunpack.c.l.b16 %v36
    %v85 = vunpack.c.l.b16 %v37
    %v86 = vunpack.c.l.b16 %v38
    %v87 = vpack.c.b16 %v72, %v71
    %v88 = vpack.c.b16 %v74, %v73
    %v89 = vpack.c.b16 %v76, %v75
    %v90 = vpack.c.b16 %v78, %v77
    %v91 = vpack.c.b16 %v80, %v79
    %v92 = vpack.c.b16 %v82, %v81
    %v93 = vpack.c.b16 %v84, %v83
    %v94 = vpack.c.b16 %v86, %v85
    %103 = vmatpush.bf16.msra.mxu0 %v94
    %104 = vmatpush.bf16.msra.mxu0 %v93
    %105 = vmatpush.bf16.msra.mxu0 %v92
    %106 = vmatpush.bf16.msra.mxu0 %v91
    %107 = vmatpush.bf16.msra.mxu0 %v90
    %108 = vmatpush.bf16.msra.mxu0 %v89
    %109 = vmatpush.bf16.msra.mxu0 %v88
    %110 = vmatpush.bf16.msra.mxu0 %v87
    %111 = vmatmul.bf16.gmra.mxu0 %v51
    %v112 = vpop.f32.mrf.mxu0
    %v113 = vadd.f32 %v41, %v112
    %v114 = vpop.f32.mrf.mxu0
    %v115 = vadd.f32 %v41, %v114
    %116 = vmatmul.bf16.gmra.mxu0 %v52
    %v117 = vpop.f32.mrf.mxu0
    %v118 = vadd.f32 %v41, %v117
    %v119 = vpop.f32.mrf.mxu0
    %v120 = vadd.f32 %v41, %v119
    %121 = vdwg.mxu0
    %v122 = vtanh.pop %v113
    %v123 = vtanh.pop %v115
    %v124 = vtanh.pop %v118
    %v125 = vtanh.pop %v120
    %v126 = vld [vmem:[%s3] sm:$0x1]
    %v128 = vperm.slane %v126, 0
    %v130 = vmul.f32 %v122, %v128
    %v131 = vmul.f32 %v123, %v128
    %v132 = vmul.f32 %v124, %v128
    %v133 = vmul.f32 %v125, %v128
    %vm134 = vcmask 261120
    %v135 = vsel %vm134, %v130, 0.0
    %136 = vadd.xlane.f32.xlu0 %v135
    %v137 = vpop.xlane.xlu0 %136
    %v138 = vsel %vm134, %v131, 0.0
    %139 = vadd.xlane.f32.xlu0 %v138
    %v140 = vpop.xlane.xlu0 %139
    %v141 = vsel %vm134, %v132, 0.0
    %142 = vadd.xlane.f32.xlu0 %v141
    %v143 = vpop.xlane.xlu0 %142
    %v144 = vsel %vm134, %v133, 0.0
    %145 = vadd.xlane.f32.xlu0 %v144
    %v146 = vpop.xlane.xlu0 %145
    %v147 = vlaneseq
    %v148 = vand.u32 %v147, 127
    %vm149 = vcmp.lt.s32.totalorder %v148, 8
    %v154 = vperm.slane %v137, %v148
    %v155 = vadd.s32 %v148, 4294967288
    %v156 = vperm.slane %v140, %v155
    %vm157 = vcmask 130112
    %v158 = vsel %vm157, %v156, %v154
    %v159 = vperm.slane %v143, %v148
    %v160 = vperm.slane %v146, %v155
    %v161 = vsel %vm157, %v160, %v159
    %vm162 = vcmask 1041409
    %v163 = vsel %vm162, %v161, %v158
    %v165 = vsel %vm149, %v163, -1e+30
    %vm166 = vcmask 123904
    %v167 = vsel %vm166, %v165, -inf
    %168 = vmax.xlane.f32.xlu0 %v167
    %v169 = vpop.xlane.xlu0 %168
    %v170 = vsub.f32 %v165, %v169
    %v171 = vmul.f32 %v170, 1.442695
    %v172 = vpow.pop %v171
    %v173 = vsel %vm166, %v172, 0.0
    %174 = vadd.xlane.f32.xlu0 %v173
    %v175 = vpop.xlane.xlu0 %174
    %v176 = vrcp.pop %v175
    %v177 = vmul.f32 %v172, %v176
    %v178 = vpack.c.bf16 %v177, %v177
    %v180 = vrot.slane %v178, 3
    %vm181 = vcmask 1040384
    %v184 = vsel %vm181, %v178, %v180
    %v186 = vunpack.i.l.s16 %v184
    %v187 = vunpack.i.h.s16 %v184
    %v188 = vpack.i.b16 %v186, %v186
    %v189 = vperm.slane %v188, 0
    %vm190 = vcmask 130048
    %v192 = vsel %vm190, %v189, 0
    %194 = vmatpush.bf16.msra.mxu0 0
    %195 = vmatpush.bf16.msra.mxu0 0
    %196 = vmatpush.bf16.msra.mxu0 0
    %197 = vmatpush.bf16.msra.mxu0 0
    %198 = vmatpush.bf16.msra.mxu0 0
    %199 = vmatpush.bf16.msra.mxu0 0
    %200 = vmatpush.bf16.msra.mxu0 0
    %201 = vmatpush.bf16.msra.mxu0 %v51
    %202 = vmatmul.bf16.gmra.mxu0 %v192
    %v203 = vpop.f32.mrf.mxu0
    %v204 = vadd.f32 0.0, %v203
    %v205 = vpop.f32.mrf.mxu0
    %206 = vdwg.mxu0
    %v207 = vpack.i.b16 %v187, %v187
    %v208 = vperm.slane %v207, 0
    %v210 = vsel %vm190, %v208, 0
    %212 = vmatpush.bf16.msra.mxu0 0
    %213 = vmatpush.bf16.msra.mxu0 0
    %214 = vmatpush.bf16.msra.mxu0 0
    %215 = vmatpush.bf16.msra.mxu0 0
    %216 = vmatpush.bf16.msra.mxu0 0
    %217 = vmatpush.bf16.msra.mxu0 0
    %218 = vmatpush.bf16.msra.mxu0 0
    %219 = vmatpush.bf16.msra.mxu0 %v52
    %220 = vmatmul.bf16.gmra.mxu0 %v210
    %v221 = vpop.f32.mrf.mxu0
    %v222 = vadd.f32 0.0, %v221
    %v223 = vpop.f32.mrf.mxu0
    %224 = vdwg.mxu0
    %v227 = vrot.slane %v222, 7
    %v228 = vsel %vm162, %v227, %v204
    %230 = vst [vmem:[#allocation2] sm:$0x3] %v228
    // Predicated region
    $region18: #{tpu_custom_call.1} parent=1 // pred_check
      _
    $region19: #{tpu_custom_call.1} parent=1 // pred_check_branch
      %232 = sbr.rel (0) target = $region21
    $region20: #{tpu_custom_call.1} parent=1 // pred_region
      %234 = vsyncadd [#allocation3], 0
      %s236 = sshll.u32 [#allocation2], 4
      %s237 = int_to_ptr.vmem [resolvable:$true] %s236
      %s238 = sshll.u32 %s4, 4
      %s239 = int_to_ptr.hbm [resolvable:$true] %s238
      %241 = dma.vmem_to_hbm [thread:$0]  %s237, 32, %s239, [#allocation3]
    $region21: #{tpu_custom_call.1} parent=1 // pred_fallthru
      _
    // Predicated region
    $region22: #{tpu_custom_call.1} parent=1 // pred_check
      _
    $region23: #{tpu_custom_call.1} parent=1 // pred_check_branch
      %243 = sbr.rel (0) target = $region25
    $region24: #{tpu_custom_call.1} parent=1 // pred_region
      %245 = dma.done [#allocation3], 32
    $region25: #{tpu_custom_call.1} parent=1 // pred_fallthru
      _
    %246 = vsyncpa [#allocation3], 1

</llo_original>
